<compile_context>
chip_gen: v7x
topology: tpu7x:2x2x1
jax: 0.10.0
libtpu: 0.0.40
codegen_flags: <defaults>
</compile_context>

<pallas_src>
import math

import jax
import jax.numpy as jnp
from jax.experimental import pallas as pl
from jax.experimental.pallas import tpu as pltpu

_LANE = 128
_SUBLANE = 8


def _rup(x, m):
    return (x + m - 1) // m * m


def _cdiv(a, b):
    return (a + b - 1) // b


def _make_kernel(*, OH, OW, TH, Wo_pad, Kdim, TC, w_resident, has_halo):
    """One (batch, H-tile, Cout-tile) grid step.

    x_ref : (1, TH, Wq, Kdim)    phase-folded input rows of this H tile
    h_ref : (1, Hh, Wq, Kdim)    the (OH-1)-row halo (rows just below the tile)
    w_ref : (CT|1, OH*OW, Kdim, TC)  per-offset weight matrices (K = folded phases*Cin)
    b_ref : (1, 1, TC)           bias (f32)
    o_ref : (1, TH, Wo_pad, TC)
    acc   : (TH*Wo_pad, TC) f32 VMEM scratch accumulator
    """

    def kernel(*refs):
        if has_halo:
            x_ref, h_ref, w_ref, b_ref, o_ref, acc_ref = refs
        else:
            x_ref, w_ref, b_ref, o_ref, acc_ref = refs
            h_ref = None
        wc = pl.program_id(2) if w_resident else 0
        for oh in range(OH):
            for ow in range(OW):
                wk = w_ref[wc, oh * OW + ow]                      # (Kdim, TC)
                m_top = (TH - oh) * Wo_pad
                if TH > oh:
                    # TODO(synk): this sublane-offset slice materializes a copy per tap;
                    #             fold kw into K or use pltpu.roll if vld/vst saturates.
                    top = x_ref[0, oh:TH, ow:ow + Wo_pad, :]
                    top = top.reshape(m_top, Kdim)
                    part = jnp.dot(top, wk, preferred_element_type=jnp.float32)
                    if oh == 0 and ow == 0:
                        acc_ref[...] = part
                    else:
                        acc_ref[0:m_top, :] += part
                if oh > 0:
                    bot = h_ref[0, 0:oh, ow:ow + Wo_pad, :]
                    bot = bot.reshape(oh * Wo_pad, Kdim)
                    acc_ref[m_top:, :] += jnp.dot(
                        bot, wk, preferred_element_type=jnp.float32)
        out = acc_ref[...] + b_ref[0]                             # (M, TC) + (1, TC)
        o_ref[...] = out.reshape(1, TH, Wo_pad, TC).astype(o_ref.dtype)

    return kernel


def conv2d_static_same_padding(x, w, b=None, stride=(1, 1), *,
                               compute_dtype=None, tile_h=None, weight_resident=None):
    """TF/Keras-style SAME-padded conv2d (Conv2dStaticSamePadding.forward).

    x: (N, Cin, H, W) NCHW;  w: (Cout, Cin, KH, KW) OIHW;  b: (Cout,) or None.
    Returns (N, Cout, Ho, Wo) NCHW with dtype == x.dtype.
    """
    N, Cin, H, W = x.shape
    Cout, Cin_w, KH, KW = w.shape
    assert Cin_w == Cin, "groups > 1 not supported"  # TODO(synk): grouped/depthwise conv
    if isinstance(stride, int):
        stride = (stride, stride)
    sh, sw = int(stride[0]), int(stride[1])
    cdt = jnp.dtype(compute_dtype) if compute_dtype is not None else jnp.dtype(x.dtype)
    out_dtype = x.dtype
    in_item = cdt.itemsize
    out_item = jnp.dtype(out_dtype).itemsize

    # ---- TF/Keras SAME padding, exactly as the PyTorch module computes it. ----------
    extra_h = (math.ceil(W / sw) - 1) * sw - W + KW
    extra_v = (math.ceil(H / sh) - 1) * sh - H + KH
    left = extra_h // 2            # may be negative -> crop (F.pad semantics)
    top = extra_v // 2
    Ho = (H + extra_v - KH) // sh + 1
    Wo = (W + extra_h - KW) // sw + 1

    # ---- Phase-decomposition geometry (stride phases folded into the MXU K dim). ----
    OH = (KH - 1) // sh + 1        # distinct row taps after folding
    OW = (KW - 1) // sw + 1
    Hh = OH - 1                    # halo rows (phase-grid units)
    ph_h = min(sh, KH)             # only keep phases that actually carry taps
    ph_w = min(sw, KW)
    Kdim = ph_h * ph_w * Cin
    n_taps = OH * OW

    # ---- Output tiling: lane-dense Cout (pad to 128), sublane-aligned W. ------------
    Cout_pad = _rup(Cout, _LANE)
    TC = 2 * _LANE if Cout_pad % (2 * _LANE) == 0 else _LANE
    CT = Cout_pad // TC
    Wo_pad = _rup(Wo, _SUBLANE)
    Wq = Wo_pad + OW - 1

    # ---- Generation-aware VMEM budget. -----------------------------------------------
    try:
        vmem_cap = int(pltpu.get_tpu_info().vmem_capacity_bytes)
    except Exception:
        vmem_cap = 64 * 1024 * 1024
    budget = vmem_cap // 2

    in_row = _rup(Wq, _SUBLANE) * _rup(Kdim, _LANE) * in_item     # per phase-grid row
    out_row = Wo_pad * TC * out_item
    acc_row = Wo_pad * TC * 4
    w_tile = n_taps * _rup(Kdim, _SUBLANE) * TC * in_item
    w_resident = 2 * CT * w_tile <= budget // 3
    if weight_resident is not None:
        w_resident = bool(weight_resident)
    w_alloc = 2 * (CT * w_tile if w_resident else w_tile)

    per_row = 2 * in_row + 2 * out_row + acc_row
    avail = budget - w_alloc - 2 * Hh * in_row - (1 << 20)
    TH = max(1, min(Ho, avail // per_row))
    if tile_h is not None:
        TH = max(1, min(TH, int(tile_h)))
    unit = max(Hh, 1)
    if N * CT == 1 and Ho > unit:          # give v7x's 2 TensorCores something to split
        TH = min(TH, _rup(_cdiv(Ho, 2), unit))
    TH = max(unit, TH // unit * unit)      # halo trick needs TH % Hh == 0
    HT = _cdiv(Ho, TH)
    TH = max(unit, _rup(_cdiv(Ho, HT), unit))   # rebalance to minimize padded rows
    Ho_pad = HT * TH
    Hq = Ho_pad + Hh
    Hp, Wp = Hq * sh, Wq * sw

    # ---- Pad (crop when TF-SAME is negative) and phase-fold in a single transpose:
    #   xq[n, i, j, (ph*ph_w + pw)*Cin + c] = x_padded[n, c, i*sh + ph, j*sw + pw]
    xq = x.astype(cdt)
    xq = xq[:, :, max(0, -top):, max(0, -left):]
    xq = jnp.pad(xq, ((0, 0), (0, 0),
                      (max(0, top), Hp - H - top),
                      (max(0, left), Wp - W - left)))
    xq = xq.reshape(N, Cin, Hq, sh, Wq, sw)[:, :, :, :ph_h, :, :ph_w]
    xq = jnp.transpose(xq, (0, 2, 4, 3, 5, 1)).reshape(N, Hq, Wq, Kdim)

    # ---- Per-offset weight matrices (Cout zero-padded, split into CT lane tiles). ----
    w_hwio = jnp.transpose(w, (2, 3, 1, 0)).astype(cdt)           # (KH, KW, Cin, Cout)
    w_hwio = jnp.pad(w_hwio, ((0, 0), (0, 0), (0, 0), (0, Cout_pad - Cout)))
    wmat = jnp.zeros((OH, OW, ph_h, ph_w, Cin, Cout_pad), cdt)
    for kh in range(KH):
        for kw in range(KW):
            wmat = wmat.at[kh // sh, kw // sw, kh % sh, kw % sw].set(w_hwio[kh, kw])
    wmat = wmat.reshape(n_taps, Kdim, CT, TC)
    wmat = jnp.transpose(wmat, (2, 0, 1, 3))                      # (CT, taps, Kdim, TC)

    b_arr = b if b is not None else jnp.zeros((Cout,), jnp.float32)
    b_arr = jnp.pad(b_arr.astype(jnp.float32), (0, Cout_pad - Cout)).reshape(CT, 1, TC)

    has_halo = Hh > 0
    kernel = _make_kernel(OH=OH, OW=OW, TH=TH, Wo_pad=Wo_pad, Kdim=Kdim, TC=TC,
                          w_resident=w_resident, has_halo=has_halo)

    in_specs = [pl.BlockSpec((1, TH, Wq, Kdim), lambda n, t, c: (n, t, 0, 0))]
    inputs = [xq]
    if has_halo:
        bpt = TH // Hh                       # halo block index step (block size = Hh)
        in_specs.append(pl.BlockSpec((1, Hh, Wq, Kdim),
                                     lambda n, t, c: (n, (t + 1) * bpt, 0, 0)))
        inputs.append(xq)                    # same array, tiny halo-row window
    if w_resident:
        in_specs.append(pl.BlockSpec((CT, n_taps, Kdim, TC),
                                     lambda n, t, c: (0, 0, 0, 0)))   # fetched once
    else:
        in_specs.append(pl.BlockSpec((1, n_taps, Kdim, TC),
                                     lambda n, t, c: (c, 0, 0, 0)))
    inputs.append(wmat)
    in_specs.append(pl.BlockSpec((1, 1, TC), lambda n, t, c: (c, 0, 0)))
    inputs.append(b_arr)

    vmem_est = (2 * (TH + Hh) * in_row + w_alloc + 2 * TH * out_row
                + TH * acc_row + (2 << 20))
    vmem_limit = int(min(vmem_cap * 9 // 10,
                         max(32 * 1024 * 1024, vmem_est * 5 // 4)))

    out_padded = pl.pallas_call(
        kernel,
        out_shape=jax.ShapeDtypeStruct((N, Ho_pad, Wo_pad, Cout_pad), out_dtype),
        grid_spec=pltpu.PrefetchScalarGridSpec(
            num_scalar_prefetch=0,
            grid=(N, HT, CT),
            in_specs=in_specs,
            out_specs=pl.BlockSpec((1, TH, Wo_pad, TC), lambda n, t, c: (n, t, 0, c)),
            scratch_shapes=[pltpu.VMEM((TH * Wo_pad, TC), jnp.float32)],
        ),
        compiler_params=pltpu.CompilerParams(
            dimension_semantics=("parallel", "parallel", "parallel"),
            vmem_limit_bytes=vmem_limit,
        ),
    )(*inputs)

    out = out_padded[:, :Ho, :Wo, :Cout]
    return jnp.transpose(out, (0, 3, 1, 2))                       # NHWC -> NCHW


# ----------------------------- reference & self-test --------------------------------

def _torch_ref(x, w, b, stride):
    """F.pad(TF-SAME, possibly negative) followed by a strided VALID conv."""
    N, Cin, H, W = x.shape
    Cout, _, KH, KW = w.shape
    sh, sw = stride
    extra_h = (math.ceil(W / sw) - 1) * sw - W + KW
    extra_v = (math.ceil(H / sh) - 1) * sh - H + KH
    left = extra_h // 2
    right = extra_h - left
    top = extra_v // 2
    bottom = extra_v - top
    xr = x[:, :, max(0, -top): H - max(0, -bottom), max(0, -left): W - max(0, -right)]
    xr = jnp.pad(xr, ((0, 0), (0, 0),
                      (max(0, top), max(0, bottom)),
                      (max(0, left), max(0, right))))
    out = jax.lax.conv_general_dilated(
        xr, w, window_strides=stride, padding="VALID",
        dimension_numbers=("NCHW", "OIHW", "NCHW"))
    if b is not None:
        out = out + b[None, :, None, None]
    return out


def _check(name, x, w, b, stride, atol, rtol, **kwargs):
    out = conv2d_static_same_padding(x, w, b, stride, **kwargs)
    out = jax.block_until_ready(out)
    ref = _torch_ref(x, w, b, stride)
    assert out.shape == ref.shape, (name, out.shape, ref.shape)
    ok = bool(jnp.allclose(out.astype(jnp.float32), ref.astype(jnp.float32),
                           atol=atol, rtol=rtol))
    assert ok, (name, float(jnp.max(jnp.abs(out.astype(jnp.float32)
                                            - ref.astype(jnp.float32)))))


if __name__ == "__main__":
    key = jax.random.PRNGKey(0)
    kx, kw_key, kb_key = jax.random.split(key, 3)

    # Small shapes consistent with the module: Conv2dStaticSamePadding(4, 8, 3, stride=2)
    N, Cin, H, W = 2, 4, 16, 16
    Cout, KH, KW = 8, 3, 3

    x = jax.random.normal(kx, (N, Cin, H, W), dtype=jnp.float32)
    fan_in = Cin * KH * KW
    bound = 1.0 / math.sqrt(fan_in)
    w = jax.random.uniform(kw_key, (Cout, Cin, KH, KW), jnp.float32, -bound, bound)
    b = jax.random.uniform(kb_key, (Cout,), jnp.float32, -bound, bound)

    _check("3x3 s2 f32", x, w, b, (2, 2), 1e-4, 1e-4)
    _check("3x3 s2 f32 H-tiled", x, w, b, (2, 2), 1e-4, 1e-4, tile_h=4)
    _check("3x3 s2 f32 streamed-w", x, w, b, (2, 2), 1e-4, 1e-4, weight_resident=False)
    _check("3x3 s1 f32", x, w, b, (1, 1), 1e-4, 1e-4)
    _check("3x3 s1 f32 H-tiled", x, w, b, (1, 1), 1e-4, 1e-4, tile_h=6)
    _check("3x3 s2 bf16-compute", x, w, b, (2, 2), 7.5e-2, 7.5e-2,
           compute_dtype=jnp.bfloat16)

    # 1x1 / stride-2: negative TF-SAME padding (crop) path, phase-pruned K, TC=256 tile.
    w1 = jax.random.uniform(kw_key, (256, Cin, 1, 1), jnp.float32, -0.5, 0.5)
    b1 = jax.random.uniform(kb_key, (256,), jnp.float32, -0.5, 0.5)
    _check("1x1 s2 f32 Cout=256", x, w1, b1, (2, 2), 1e-4, 1e-4)

    # 5x5 / stride-2 with Cout=40: 2-row halo assembly across H tiles + Cout padding.
    bound5 = 1.0 / math.sqrt(Cin * 25)
    w5 = jax.random.uniform(kw_key, (40, Cin, 5, 5), jnp.float32, -bound5, bound5)
    b5 = jax.random.uniform(kb_key, (40,), jnp.float32, -bound5, bound5)
    _check("5x5 s2 f32 Cout=40", x, w5, b5, (2, 2), 1e-3, 1e-3, tile_h=4)

    print("KERNEL_OK")
</pallas_src>

<mosaic_0001>
module attributes {stable_mosaic.version = 11 : i64} {
  func.func @kernel(%arg0: i32, %arg1: i32, %arg2: i32, %arg3: memref<1x8x9x16xf32, #tpu.memory_space<vmem>>, %arg4: memref<1x1x9x16xf32, #tpu.memory_space<vmem>>, %arg5: memref<1x4x16x128xf32, #tpu.memory_space<vmem>>, %arg6: memref<1x1x128xf32, #tpu.memory_space<vmem>>, %arg7: memref<1x8x8x128xf32, #tpu.memory_space<vmem>>, %arg8: memref<64x128xf32, #tpu.memory_space<vmem>>) attributes {dimension_semantics = [#tpu.dimension_semantics<parallel>, #tpu.dimension_semantics<parallel>, #tpu.dimension_semantics<parallel>], iteration_bounds = array<i64: 2, 1, 1>, scalar_prefetch = 0 : i64, scratch_operands = 1 : i64, tpu.core_type = #tpu.core_type<tc>, window_params = [{transform_indices = @transform_0, window_bounds = array<i64: 1, 8, 9, 16>}, {transform_indices = @transform_1, window_bounds = array<i64: 1, 1, 9, 16>}, {pipeline_mode = #tpu.pipeline_mode<synchronous>, transform_indices = @transform_2, window_bounds = array<i64: 1, 4, 16, 128>}, {transform_indices = @transform_3, window_bounds = array<i64: 1, 1, 128>}, {transform_indices = @transform_4, window_bounds = array<i64: 1, 8, 8, 128>}]} {
    %0 = arith.index_cast %arg2 : i32 to index
    %c0 = arith.constant 0 : index
    %c0_0 = arith.constant 0 : index
    %c0_1 = arith.constant 0 : index
    %1 = vector.load %arg5[%0, %c0, %c0_0, %c0_1] : memref<1x4x16x128xf32, #tpu.memory_space<vmem>>, vector<1x1x16x128xf32>
    %2 = vector.shape_cast %1 : vector<1x1x16x128xf32> to vector<16x128xf32>
    %c0_2 = arith.constant 0 : index
    %c0_3 = arith.constant 0 : index
    %c0_4 = arith.constant 0 : index
    %c0_5 = arith.constant 0 : index
    %3 = vector.load %arg3[%c0_2, %c0_3, %c0_4, %c0_5] : memref<1x8x9x16xf32, #tpu.memory_space<vmem>>, vector<1x8x8x16xf32>
    %4 = vector.shape_cast %3 : vector<1x8x8x16xf32> to vector<8x8x16xf32>
    %5 = vector.shape_cast %4 : vector<8x8x16xf32> to vector<64x16xf32>
    %cst = arith.constant dense<0.000000e+00> : vector<64x128xf32>
    %6 = tpu.matmul %5, %2, %cst {dimension_numbers = #tpu.dot_dimension_numbers<[1], [0], [0], [1], [0, 0, 1, 1], [], []>} : vector<64x16xf32>, vector<16x128xf32>, vector<64x128xf32> -> vector<64x128xf32>
    %c0_6 = arith.constant 0 : index
    %c0_7 = arith.constant 0 : index
    %7 = vector.load %arg8[%c0_6, %c0_7] : memref<64x128xf32, #tpu.memory_space<vmem>>, vector<64x128xf32>
    tpu.vector_store %arg8[%c0_6, %c0_7], %6 {strides = array<i32>} : memref<64x128xf32, #tpu.memory_space<vmem>>, vector<64x128xf32>,
    %8 = arith.index_cast %arg2 : i32 to index
    %c1 = arith.constant 1 : index
    %c0_8 = arith.constant 0 : index
    %c0_9 = arith.constant 0 : index
    %9 = vector.load %arg5[%8, %c1, %c0_8, %c0_9] : memref<1x4x16x128xf32, #tpu.memory_space<vmem>>, vector<1x1x16x128xf32>
    %10 = vector.shape_cast %9 : vector<1x1x16x128xf32> to vector<16x128xf32>
    %c0_10 = arith.constant 0 : index
    %c0_11 = arith.constant 0 : index
    %c1_12 = arith.constant 1 : index
    %c0_13 = arith.constant 0 : index
    %11 = vector.load %arg3[%c0_10, %c0_11, %c1_12, %c0_13] : memref<1x8x9x16xf32, #tpu.memory_space<vmem>>, vector<1x8x8x16xf32>
    %12 = vector.shape_cast %11 : vector<1x8x8x16xf32> to vector<8x8x16xf32>
    %13 = vector.shape_cast %12 : vector<8x8x16xf32> to vector<64x16xf32>
    %cst_14 = arith.constant dense<0.000000e+00> : vector<64x128xf32>
    %14 = tpu.matmul %13, %10, %cst_14 {dimension_numbers = #tpu.dot_dimension_numbers<[1], [0], [0], [1], [0, 0, 1, 1], [], []>} : vector<64x16xf32>, vector<16x128xf32>, vector<64x128xf32> -> vector<64x128xf32>
    %c0_15 = arith.constant 0 : index
    %c0_16 = arith.constant 0 : index
    %15 = vector.load %arg8[%c0_15, %c0_16] : memref<64x128xf32, #tpu.memory_space<vmem>>, vector<64x128xf32>
    %16 = arith.addf %15, %14 : vector<64x128xf32>
    %c0_17 = arith.constant 0 : index
    %c0_18 = arith.constant 0 : index
    %17 = vector.load %arg8[%c0_17, %c0_18] : memref<64x128xf32, #tpu.memory_space<vmem>>, vector<64x128xf32>
    tpu.vector_store %arg8[%c0_17, %c0_18], %16 {strides = array<i32>} : memref<64x128xf32, #tpu.memory_space<vmem>>, vector<64x128xf32>,
    %18 = arith.index_cast %arg2 : i32 to index
    %c2 = arith.constant 2 : index
    %c0_19 = arith.constant 0 : index
    %c0_20 = arith.constant 0 : index
    %19 = vector.load %arg5[%18, %c2, %c0_19, %c0_20] : memref<1x4x16x128xf32, #tpu.memory_space<vmem>>, vector<1x1x16x128xf32>
    %20 = vector.shape_cast %19 : vector<1x1x16x128xf32> to vector<16x128xf32>
    %c0_21 = arith.constant 0 : index
    %c1_22 = arith.constant 1 : index
    %c0_23 = arith.constant 0 : index
    %c0_24 = arith.constant 0 : index
    %21 = vector.load %arg3[%c0_21, %c1_22, %c0_23, %c0_24] : memref<1x8x9x16xf32, #tpu.memory_space<vmem>>, vector<1x7x8x16xf32>
    %22 = vector.shape_cast %21 : vector<1x7x8x16xf32> to vector<7x8x16xf32>
    %23 = vector.shape_cast %22 : vector<7x8x16xf32> to vector<56x16xf32>
    %cst_25 = arith.constant dense<0.000000e+00> : vector<56x128xf32>
    %24 = tpu.matmul %23, %20, %cst_25 {dimension_numbers = #tpu.dot_dimension_numbers<[1], [0], [0], [1], [0, 0, 1, 1], [], []>} : vector<56x16xf32>, vector<16x128xf32>, vector<56x128xf32> -> vector<56x128xf32>
    %c0_26 = arith.constant 0 : index
    %c0_27 = arith.constant 0 : index
    %25 = vector.load %arg8[%c0_26, %c0_27] : memref<64x128xf32, #tpu.memory_space<vmem>>, vector<56x128xf32>
    %26 = arith.addf %25, %24 : vector<56x128xf32>
    %c0_28 = arith.constant 0 : index
    %c0_29 = arith.constant 0 : index
    %27 = vector.load %arg8[%c0_28, %c0_29] : memref<64x128xf32, #tpu.memory_space<vmem>>, vector<56x128xf32>
    tpu.vector_store %arg8[%c0_28, %c0_29], %26 {strides = array<i32>} : memref<64x128xf32, #tpu.memory_space<vmem>>, vector<56x128xf32>,
    %c0_30 = arith.constant 0 : index
    %c0_31 = arith.constant 0 : index
    %c0_32 = arith.constant 0 : index
    %c0_33 = arith.constant 0 : index
    %28 = vector.load %arg4[%c0_30, %c0_31, %c0_32, %c0_33] : memref<1x1x9x16xf32, #tpu.memory_space<vmem>>, vector<1x1x8x16xf32>
    %29 = vector.shape_cast %28 : vector<1x1x8x16xf32> to vector<1x8x16xf32>
    %30 = vector.shape_cast %29 : vector<1x8x16xf32> to vector<8x16xf32>
    %c56 = arith.constant 56 : index
    %c0_34 = arith.constant 0 : index
    %31 = vector.load %arg8[%c56, %c0_34] : memref<64x128xf32, #tpu.memory_space<vmem>>, vector<8x128xf32>
    %cst_35 = arith.constant dense<0.000000e+00> : vector<8x128xf32>
    %32 = tpu.matmul %30, %20, %cst_35 {dimension_numbers = #tpu.dot_dimension_numbers<[1], [0], [0], [1], [0, 0, 1, 1], [], []>} : vector<8x16xf32>, vector<16x128xf32>, vector<8x128xf32> -> vector<8x128xf32>
    %33 = arith.addf %31, %32 : vector<8x128xf32>
    %c56_36 = arith.constant 56 : index
    %c0_37 = arith.constant 0 : index
    %34 = vector.load %arg8[%c56_36, %c0_37] : memref<64x128xf32, #tpu.memory_space<vmem>>, vector<8x128xf32>
    tpu.vector_store %arg8[%c56_36, %c0_37], %33 {strides = array<i32>} : memref<64x128xf32, #tpu.memory_space<vmem>>, vector<8x128xf32>,
    %35 = arith.index_cast %arg2 : i32 to index
    %c3 = arith.constant 3 : index
    %c0_38 = arith.constant 0 : index
    %c0_39 = arith.constant 0 : index
    %36 = vector.load %arg5[%35, %c3, %c0_38, %c0_39] : memref<1x4x16x128xf32, #tpu.memory_space<vmem>>, vector<1x1x16x128xf32>
    %37 = vector.shape_cast %36 : vector<1x1x16x128xf32> to vector<16x128xf32>
    %c0_40 = arith.constant 0 : index
    %c1_41 = arith.constant 1 : index
    %c1_42 = arith.constant 1 : index
    %c0_43 = arith.constant 0 : index
    %38 = vector.load %arg3[%c0_40, %c1_41, %c1_42, %c0_43] : memref<1x8x9x16xf32, #tpu.memory_space<vmem>>, vector<1x7x8x16xf32>
    %39 = vector.shape_cast %38 : vector<1x7x8x16xf32> to vector<7x8x16xf32>
    %40 = vector.shape_cast %39 : vector<7x8x16xf32> to vector<56x16xf32>
    %cst_44 = arith.constant dense<0.000000e+00> : vector<56x128xf32>
    %41 = tpu.matmul %40, %37, %cst_44 {dimension_numbers = #tpu.dot_dimension_numbers<[1], [0], [0], [1], [0, 0, 1, 1], [], []>} : vector<56x16xf32>, vector<16x128xf32>, vector<56x128xf32> -> vector<56x128xf32>
    %c0_45 = arith.constant 0 : index
    %c0_46 = arith.constant 0 : index
    %42 = vector.load %arg8[%c0_45, %c0_46] : memref<64x128xf32, #tpu.memory_space<vmem>>, vector<56x128xf32>
    %43 = arith.addf %42, %41 : vector<56x128xf32>
    %c0_47 = arith.constant 0 : index
    %c0_48 = arith.constant 0 : index
    %44 = vector.load %arg8[%c0_47, %c0_48] : memref<64x128xf32, #tpu.memory_space<vmem>>, vector<56x128xf32>
    tpu.vector_store %arg8[%c0_47, %c0_48], %43 {strides = array<i32>} : memref<64x128xf32, #tpu.memory_space<vmem>>, vector<56x128xf32>,
    %c0_49 = arith.constant 0 : index
    %c0_50 = arith.constant 0 : index
    %c1_51 = arith.constant 1 : index
    %c0_52 = arith.constant 0 : index
    %45 = vector.load %arg4[%c0_49, %c0_50, %c1_51, %c0_52] : memref<1x1x9x16xf32, #tpu.memory_space<vmem>>, vector<1x1x8x16xf32>
    %46 = vector.shape_cast %45 : vector<1x1x8x16xf32> to vector<1x8x16xf32>
    %47 = vector.shape_cast %46 : vector<1x8x16xf32> to vector<8x16xf32>
    %c56_53 = arith.constant 56 : index
    %c0_54 = arith.constant 0 : index
    %48 = vector.load %arg8[%c56_53, %c0_54] : memref<64x128xf32, #tpu.memory_space<vmem>>, vector<8x128xf32>
    %cst_55 = arith.constant dense<0.000000e+00> : vector<8x128xf32>
    %49 = tpu.matmul %47, %37, %cst_55 {dimension_numbers = #tpu.dot_dimension_numbers<[1], [0], [0], [1], [0, 0, 1, 1], [], []>} : vector<8x16xf32>, vector<16x128xf32>, vector<8x128xf32> -> vector<8x128xf32>
    %50 = arith.addf %48, %49 : vector<8x128xf32>
    %c56_56 = arith.constant 56 : index
    %c0_57 = arith.constant 0 : index
    %51 = vector.load %arg8[%c56_56, %c0_57] : memref<64x128xf32, #tpu.memory_space<vmem>>, vector<8x128xf32>
    tpu.vector_store %arg8[%c56_56, %c0_57], %50 {strides = array<i32>} : memref<64x128xf32, #tpu.memory_space<vmem>>, vector<8x128xf32>,
    %c0_58 = arith.constant 0 : index
    %c0_59 = arith.constant 0 : index
    %52 = vector.load %arg8[%c0_58, %c0_59] : memref<64x128xf32, #tpu.memory_space<vmem>>, vector<64x128xf32>
    %c0_60 = arith.constant 0 : index
    %c0_61 = arith.constant 0 : index
    %c0_62 = arith.constant 0 : index
    %53 = vector.load %arg6[%c0_60, %c0_61, %c0_62] : memref<1x1x128xf32, #tpu.memory_space<vmem>>, vector<1x1x128xf32>
    %54 = vector.shape_cast %53 : vector<1x1x128xf32> to vector<1x128xf32>
    %55 = vector.broadcast %54 : vector<1x128xf32> to vector<64x128xf32>
    %56 = arith.addf %52, %55 : vector<64x128xf32>
    %57 = vector.shape_cast %56 : vector<64x128xf32> to vector<1x8x8x128xf32>
    %c0_63 = arith.constant 0 : index
    %c0_64 = arith.constant 0 : index
    %c0_65 = arith.constant 0 : index
    %c0_66 = arith.constant 0 : index
    %58 = vector.load %arg7[%c0_63, %c0_64, %c0_65, %c0_66] : memref<1x8x8x128xf32, #tpu.memory_space<vmem>>, vector<1x8x8x128xf32>
    tpu.vector_store %arg7[%c0_63, %c0_64, %c0_65, %c0_66], %57 {strides = array<i32>} : memref<1x8x8x128xf32, #tpu.memory_space<vmem>>, vector<1x8x8x128xf32>,
    return
  }
  func.func @transform_0(%arg0: i32, %arg1: i32, %arg2: i32) -> (i32, i32, i32, i32) {
    %c0_i32 = arith.constant 0 : i32
    %c0_i32_0 = arith.constant 0 : i32
    %c0_i32_1 = arith.constant 0 : i32
    return %arg0, %arg1, %c0_i32, %c0_i32_0 : i32, i32, i32, i32
  }
  func.func @transform_1(%arg0: i32, %arg1: i32, %arg2: i32) -> (i32, i32, i32, i32) {
    %c1_i32 = arith.constant 1 : i32
    %0 = arith.addi %arg1, %c1_i32 : i32
    %c8_i32 = arith.constant 8 : i32
    %1 = arith.muli %0, %c8_i32 : i32
    %c0_i32 = arith.constant 0 : i32
    %c0_i32_0 = arith.constant 0 : i32
    %c0_i32_1 = arith.constant 0 : i32
    return %arg0, %1, %c0_i32, %c0_i32_0 : i32, i32, i32, i32
  }
  func.func @transform_2(%arg0: i32, %arg1: i32, %arg2: i32) -> (i32, i32, i32, i32) {
    %c0_i32 = arith.constant 0 : i32
    %c0_i32_0 = arith.constant 0 : i32
    %c0_i32_1 = arith.constant 0 : i32
    %c0_i32_2 = arith.constant 0 : i32
    %c0_i32_3 = arith.constant 0 : i32
    return %c0_i32, %c0_i32_0, %c0_i32_1, %c0_i32_2 : i32, i32, i32, i32
  }
  func.func @transform_3(%arg0: i32, %arg1: i32, %arg2: i32) -> (i32, i32, i32) {
    %c0_i32 = arith.constant 0 : i32
    %c0_i32_0 = arith.constant 0 : i32
    %c0_i32_1 = arith.constant 0 : i32
    return %arg2, %c0_i32, %c0_i32_0 : i32, i32, i32
  }
  func.func @transform_4(%arg0: i32, %arg1: i32, %arg2: i32) -> (i32, i32, i32, i32) {
    %c0_i32 = arith.constant 0 : i32
    %c0_i32_0 = arith.constant 0 : i32
    return %arg0, %arg1, %c0_i32, %arg2 : i32, i32, i32, i32
  }
}

</mosaic_0001>

<llo_original>
// kernel: tpu_custom_call.1
$region0: #{tpu_custom_call.1}
  #allocation0 [shape = 'u32[]', space=smem, size = 0x4, offset = 0x4, fixed_abs, tag = 'smem constant byte address 0x4 - core index']
  #allocation1 [shape = 'u32[144,128]{1,0:T(1,128)}', space=vmem, size = 0x12000, scoped, tag = 'internal scratch']
  #allocation2 [shape = 'f32[64,128]{1,0:T(8,128)}', space=vmem, size = 0x8000, scoped, tag = 'scratch operand']
  %s0 = inlined_call_operand.vmem [shape: f32[2,9,9,16], index: 0, kind: input, shape index: {}]
  %s1 = inlined_call_operand.vmem [shape: f32[2,9,9,16], index: 1, kind: input, shape index: {}]
  %s2 = inlined_call_operand.vmem [shape: f32[1,4,16,128], index: 2, kind: input, shape index: {}]
  %s3 = inlined_call_operand.vmem [shape: f32[1,1,128], index: 3, kind: input, shape index: {}]
  %s4 = inlined_call_operand.hbm [shape: f32[2,8,8,128], index: 4, kind: output, shape index: {}]
  %s5 = sld [smem:[#allocation0]]
  $region49: #{tpu_custom_call.1} parent=0
    _
  %s7 = ssub.s32 1, %s5
  %s8 = scalar_select 0, %s7, %s5
  $region1: #{tpu_custom_call.1} parent=0
    #allocation3 [shape = 'u8[65536]{0}', space=vmem, size = 0x10000, scoped, tag = 'output window, operand 0']
    #allocation4 [shape = 's32[2]{0}', space=sflag, size = 0x8, scoped, tag = 'scoped memory for tpu_custom_call.1']
    %9 = vsyncpa [#allocation4], 0
    %s10 = scalar_lea.sflag [#allocation4], 1
    %11 = vsyncpa %s10, 0
    loop: start=0, step=1, limit=4
    $region2: #{tpu_custom_call.1} parent=1 // loop_pre_header
      _
    $region3: #{tpu_custom_call.1} parent=1 // loop_header
      %s13 = sphi 0, %s17
      %p14 = scmp.ge.s32.totalorder %s13, 4
      %s20 = sphi 0, %s39
      %s21 = sphi 0, %s35
      %s22 = sphi 0, %s31
      %s23 = sphi 0, %s20
      %s24 = sphi 0, %s21
      %s25 = sphi 0, %s22
      %s26 = sphi 0, %s23
      %s27 = sphi 0, %s24
      %s28 = sphi 0, %s25
      %s44 = sphi 0, %s46
      %s47 = sphi 0, %s44
      %s48 = sphi 0, %s47
      %s64 = sphi 0, %s48
      %s76 = sphi 0, %s78
      %s79 = sphi 0, %s76
      %s80 = sphi 0, %s79
      %s96 = sphi 0, %s80
      %s100 = sphi 0, %s100
      %s102 = sphi 0, %s100
      %s103 = sphi 0, %s102
      %s117 = sphi 0, %s103
      %s123 = sphi 0, %s125
      %s126 = sphi 0, %s123
      %s127 = sphi 0, %s126
      %s143 = sphi 0, %s127
      %s153 = sphi 0, %s155
      %s156 = sphi 0, %s153
      %s157 = sphi 0, %s156
      %s173 = sphi 0, %s157
    $region4: #{tpu_custom_call.1} parent=1 // loop_header_branch
      %16 = sbr.rel (%p14) target = $region8
    $region5: #{tpu_custom_call.1} parent=1 // loop_body
      %s18 = ssub.s32 %s13, 1
      %s19 = ssub.s32 %s13, 2
      %s29 = sadd.s32 1, %s22
      %p30 = scmp.ge.s32.totalorder %s29, 1
      %s31 = scalar_select %p30, 0, %s29
      %s32 = sadd.s32 1, %s21
      %s33 = scalar_select %p30, %s32, %s21
      %p34 = scmp.ge.s32.totalorder %s33, 1
      %s35 = scalar_select %p34, 0, %s33
      %s36 = sadd.s32 1, %s20
      %s37 = scalar_select %p34, %s36, %s20
      %p38 = scmp.ge.s32.totalorder %s37, 2
      %s39 = scalar_select %p38, 0, %s37
      %s40 = ssub.s32 %s20, %s39
      %s41 = ssub.s32 %s21, %s35
      %s42 = sor.u32 %s40, %s41
      %p43 = scmp.eq.s32.totalorder %s42, 0
      %s45 = sadd.s32 %s44, 1
      %s46 = scalar_select %p43, %s44, %s45
      %p49 = pneg %p43
      %p50 = scmp.eq.s32.totalorder %s13, 1
      %p51 = por %p49, %p50
      %p52 = scmp.ne.s32.totalorder %s44, %s47
      %p53 = scmp.eq.s32.totalorder %s13, 0
      %p54 = por %p52, %p53
      %p55 = scmp.ne.s32.totalorder %s44, %s47
      %p56 = scmp.eq.s32.totalorder %s18, 1
      %p57 = por %p55, %p56
      %p58 = scmp.ne.s32.totalorder %s47, %s48
      %p59 = scmp.eq.s32.totalorder %s18, 0
      %p60 = por %p58, %p59
      %p61 = scmp.ne.s32.totalorder %s47, %s48
      %p62 = scmp.eq.s32.totalorder %s19, 1
      %p63 = por %p61, %p62
      %p65 = scmp.ne.s32.totalorder %s48, %s64
      %p66 = scmp.eq.s32.totalorder %s19, 0
      %p67 = por %p65, %p66
      %s68 = sadd.s32 %s21, 1
      %s69 = smul.u32 %s68, 8
      %s70 = sadd.s32 %s35, 1
      %s71 = smul.u32 %s70, 8
      %s72 = ssub.s32 %s20, %s39
      %s73 = ssub.s32 %s69, %s71
      %s74 = sor.u32 %s72, %s73
      %p75 = scmp.eq.s32.totalorder %s74, 0
      %s77 = sadd.s32 %s76, 1
      %s78 = scalar_select %p75, %s76, %s77
      %p81 = pneg %p75
      %p82 = scmp.eq.s32.totalorder %s13, 1
      %p83 = por %p81, %p82
      %p84 = scmp.ne.s32.totalorder %s76, %s79
      %p85 = scmp.eq.s32.totalorder %s13, 0
      %p86 = por %p84, %p85
      %p87 = scmp.ne.s32.totalorder %s76, %s79
      %p88 = scmp.eq.s32.totalorder %s18, 1
      %p89 = por %p87, %p88
      %p90 = scmp.ne.s32.totalorder %s79, %s80
      %p91 = scmp.eq.s32.totalorder %s18, 0
      %p92 = por %p90, %p91
      %p93 = scmp.ne.s32.totalorder %s79, %s80
      %p94 = scmp.eq.s32.totalorder %s19, 1
      %p95 = por %p93, %p94
      %p97 = scmp.ne.s32.totalorder %s80, %s96
      %p98 = scmp.eq.s32.totalorder %s19, 0
      %p99 = por %p97, %p98
      %s101 = sadd.s32 %s100, 1
      %p104 = scmp.eq.s32.totalorder %s13, 1
      %p105 = scmp.ne.s32.totalorder %s100, %s102
      %p106 = scmp.eq.s32.totalorder %s13, 0
      %p107 = por %p105, %p106
      %p108 = scmp.ne.s32.totalorder %s100, %s102
      %p109 = scmp.eq.s32.totalorder %s18, 1
      %p110 = por %p108, %p109
      %p111 = scmp.ne.s32.totalorder %s102, %s103
      %p112 = scmp.eq.s32.totalorder %s18, 0
      %p113 = por %p111, %p112
      %p114 = scmp.ne.s32.totalorder %s102, %s103
      %p115 = scmp.eq.s32.totalorder %s19, 1
      %p116 = por %p114, %p115
      %p118 = scmp.ne.s32.totalorder %s103, %s117
      %p119 = scmp.eq.s32.totalorder %s19, 0
      %p120 = por %p118, %p119
      %s121 = ssub.s32 %s22, %s31
      %p122 = scmp.eq.s32.totalorder %s121, 0
      %s124 = sadd.s32 %s123, 1
      %s125 = scalar_select %p122, %s123, %s124
      %p128 = pneg %p122
      %p129 = scmp.eq.s32.totalorder %s13, 1
      %p130 = por %p128, %p129
      %p131 = scmp.ne.s32.totalorder %s123, %s126
      %p132 = scmp.eq.s32.totalorder %s13, 0
      %p133 = por %p131, %p132
      %p134 = scmp.ne.s32.totalorder %s123, %s126
      %p135 = scmp.eq.s32.totalorder %s18, 1
      %p136 = por %p134, %p135
      %p137 = scmp.ne.s32.totalorder %s126, %s127
      %p138 = scmp.eq.s32.totalorder %s18, 0
      %p139 = por %p137, %p138
      %p140 = scmp.ne.s32.totalorder %s126, %s127
      %p141 = scmp.eq.s32.totalorder %s19, 1
      %p142 = por %p140, %p141
      %p144 = scmp.ne.s32.totalorder %s127, %s143
      %p145 = scmp.eq.s32.totalorder %s19, 0
      %p146 = por %p144, %p145
      %s147 = ssub.s32 %s20, %s39
      %s148 = ssub.s32 %s21, %s35
      %s149 = sor.u32 %s147, %s148
      %s150 = ssub.s32 %s22, %s31
      %s151 = sor.u32 %s149, %s150
      %p152 = scmp.eq.s32.totalorder %s151, 0
      %s154 = sadd.s32 %s153, 1
      %s155 = scalar_select %p152, %s153, %s154
      %p158 = pneg %p152
      %p159 = scmp.eq.s32.totalorder %s13, 1
      %p160 = por %p158, %p159
      %p161 = scmp.ne.s32.totalorder %s153, %s156
      %p162 = scmp.eq.s32.totalorder %s13, 0
      %p163 = por %p161, %p162
      %p164 = scmp.ne.s32.totalorder %s153, %s156
      %p165 = scmp.eq.s32.totalorder %s18, 1
      %p166 = por %p164, %p165
      %p167 = scmp.ne.s32.totalorder %s156, %s157
      %p168 = scmp.eq.s32.totalorder %s18, 0
      %p169 = por %p167, %p168
      %p170 = scmp.ne.s32.totalorder %s156, %s157
      %p171 = scmp.eq.s32.totalorder %s19, 1
      %p172 = por %p170, %p171
      %p174 = scmp.ne.s32.totalorder %s157, %s173
      %p175 = scmp.eq.s32.totalorder %s19, 0
      %p176 = por %p174, %p175
      %p177 = scmp.le.s32.totalorder 1, %s13
      %p178 = scmp.lt.s32.totalorder %s13, 3
      %p179 = pnand %p177, %p178
      %p180 = pneg %p179
      // Predicated region
      $region9: #{tpu_custom_call.1} parent=5 // pred_check
        _
      $region10: #{tpu_custom_call.1} parent=5 // pred_check_branch
        %182 = sbr.rel (%p179) target = $region12
      $region11: #{tpu_custom_call.1} parent=5 // pred_region
        %s183 = ssub.s32 %s13, 1
        // Predicated region
        $region13: #{tpu_custom_call.1} parent=11 // pred_check
          %p184 = pneg %p113
        $region14: #{tpu_custom_call.1} parent=11 // pred_check_branch
          %186 = sbr.rel (%p184) target = $region16
        $region15: #{tpu_custom_call.1} parent=11 // pred_region
          _
        $region16: #{tpu_custom_call.1} parent=11 // pred_fallthru
          _
        // Predicated region
        $region17: #{tpu_custom_call.1} parent=11 // pred_check
          %p187 = pneg %p139
        $region18: #{tpu_custom_call.1} parent=11 // pred_check_branch
          %189 = sbr.rel (%p187) target = $region20
        $region19: #{tpu_custom_call.1} parent=11 // pred_region
          %p190 = scmp.lt.s32.totalorder %s25, 0
          %s191 = scalar_select %p190, %s25, 0
          %s192 = scalar_lea.vmem %s3, %s191
        $region20: #{tpu_custom_call.1} parent=11 // pred_fallthru
          _
      $region12: #{tpu_custom_call.1} parent=5 // pred_fallthru
        _
      %p193 = scmp.lt.s32.totalorder %s13, 2
      // Predicated region
      $region21: #{tpu_custom_call.1} parent=5 // pred_check
        %p194 = pneg %p193
      $region22: #{tpu_custom_call.1} parent=5 // pred_check_branch
        %196 = sbr.rel (%p194) target = $region24
      $region23: #{tpu_custom_call.1} parent=5 // pred_region
        // Predicated region
        $region25: #{tpu_custom_call.1} parent=23 // pred_check
          %p197 = pneg %p54
        $region26: #{tpu_custom_call.1} parent=23 // pred_check_branch
          %199 = sbr.rel (%p197) target = $region28
        $region27: #{tpu_custom_call.1} parent=23 // pred_region
          %s200 = smul.u32 8, %s21
          %s201 = ssub.s32 9, %s200
          %p202 = scmp.lt.s32.totalorder %s201, 8
          %s203 = scalar_select %p202, %s201, 8
          %s204 = smul.u32 128, %s203
          %s205 = smul.u32 %s204, 2
          %p206 = scmp.lt.s32.totalorder %s20, 1
          %s207 = scalar_select %p206, %s20, 1
          %p208 = scmp.lt.s32.totalorder %s200, 8
          %s209 = scalar_select %p208, %s200, 8
          %s210 = smul.addr %s209, 2
          %s211 = smul.addr %s207, 18
          %s212 = sadd.s32 %s210, %s211
          %s213 = smul.addr %s212, 8
          %s214 = scalar_lea.vmem %s0, %s213
          %s215 = smul.u32 8, %s21
          %s216 = ssub.s32 9, %s215
          %p217 = scmp.lt.s32.totalorder %s216, 8
          %s218 = scalar_select %p217, %s216, 8
          %s219 = smul.u32 128, %s218
          %s220 = smul.u32 %s219, 2
        $region28: #{tpu_custom_call.1} parent=23 // pred_fallthru
          _
        // Predicated region
        $region29: #{tpu_custom_call.1} parent=23 // pred_check
          %p221 = pneg %p86
        $region30: #{tpu_custom_call.1} parent=23 // pred_check_branch
          %223 = sbr.rel (%p221) target = $region32
        $region31: #{tpu_custom_call.1} parent=23 // pred_region
          %s224 = sadd.s32 %s21, 1
          %s225 = smul.u32 %s224, 8
          %p226 = scmp.lt.s32.totalorder %s20, 1
          %s227 = scalar_select %p226, %s20, 1
          %p228 = scmp.lt.s32.totalorder %s225, 8
          %s229 = scalar_select %p228, %s225, 8
          %s230 = smul.addr %s229, 2
          %s231 = smul.addr %s227, 18
          %s232 = sadd.s32 %s230, %s231
          %s233 = smul.addr %s232, 8
          %s234 = scalar_lea.vmem %s1, %s233
          %s235 = sadd.s32 %s21, 1
          %s236 = smul.u32 %s235, 8
        $region32: #{tpu_custom_call.1} parent=23 // pred_fallthru
          _
      $region24: #{tpu_custom_call.1} parent=5 // pred_fallthru
        _
      %p237 = scmp.le.s32.totalorder 1, %s13
      %p238 = scmp.lt.s32.totalorder %s13, 3
      %p239 = pnand %p237, %p238
      %p240 = pneg %p239
      // Predicated region
      $region33: #{tpu_custom_call.1} parent=5 // pred_check
        _
      $region34: #{tpu_custom_call.1} parent=5 // pred_check_branch
        %242 = sbr.rel (%p239) target = $region36
      $region35: #{tpu_custom_call.1} parent=5 // pred_region
        %s243 = ssub.s32 %s13, 1
        %s244 = smul.u32 8, %s24
        %s245 = ssub.s32 9, %s244
        %p246 = scmp.lt.s32.totalorder %s245, 8
        %s247 = scalar_select %p246, %s245, 8
        %s248 = smul.u32 128, %s247
        %s249 = smul.u32 %s248, 2
        %p250 = scmp.lt.s32.totalorder %s23, 1
        %s251 = scalar_select %p250, %s23, 1
        %p252 = scmp.lt.s32.totalorder %s244, 8
        %s253 = scalar_select %p252, %s244, 8
        %s254 = smul.addr %s253, 2
        %s255 = smul.addr %s251, 18
        %s256 = sadd.s32 %s254, %s255
        %s257 = smul.addr %s256, 8
        %s258 = scalar_lea.vmem %s0, %s257
        %p259 = pneg %p60
        %p260 = pneg %p57
        %s261 = sadd.s32 %s24, 1
        %s262 = smul.u32 %s261, 8
        %p263 = scmp.lt.s32.totalorder %s23, 1
        %s264 = scalar_select %p263, %s23, 1
        %p265 = scmp.lt.s32.totalorder %s262, 8
        %s266 = scalar_select %p265, %s262, 8
        %s267 = smul.addr %s266, 2
        %s268 = smul.addr %s264, 18
        %s269 = sadd.s32 %s267, %s268
        %s270 = smul.addr %s269, 8
        %s271 = scalar_lea.vmem %s1, %s270
        %p272 = pneg %p92
        %p273 = pneg %p89
        %p274 = pneg %p113
        %p275 = pneg %p110
        %p276 = scmp.lt.s32.totalorder %s25, 0
        %s277 = scalar_select %p276, %s25, 0
        %s278 = scalar_lea.vmem %s3, %s277
        %p279 = pneg %p139
        %p280 = pneg %p136
        %p281 = pneg %p169
        %p282 = pneg %p166
        %s283 = sand.u32 %s156, 1
        %s284 = scalar_lea.sflag [#allocation4], %s283
        %s285 = sand.u32 %s156, 1
        %s286 = smul.addr %s285, 64
        %s287 = scalar_lea.vmem [#allocation3], %s286
        %s288 = smul.u32 8, %s24
        %s289 = ssub.s32 9, %s288
        %p290 = scmp.lt.s32.totalorder %s289, 8
        %s291 = scalar_select %p290, %s289, 8
        %s292 = smul.u32 128, %s291
        %s293 = smul.u32 %s292, 2
        %p294 = scmp.lt.s32.totalorder %s23, 1
        %s295 = scalar_select %p294, %s23, 1
        %p296 = scmp.lt.s32.totalorder %s288, 8
        %s297 = scalar_select %p296, %s288, 8
        %s298 = smul.addr %s297, 2
        %s299 = smul.addr %s295, 18
        %s300 = sadd.s32 %s298, %s299
        %s301 = smul.addr %s300, 8
        %s302 = scalar_lea.vmem %s0, %s301
        %s303 = smul.u32 8, %s24
        %s304 = ssub.s32 9, %s303
        %p305 = scmp.lt.s32.totalorder %s304, 8
        %s306 = scalar_select %p305, %s304, 8
        %s307 = smul.u32 128, %s306
        %s308 = smul.u32 %s307, 2
        %s309 = sadd.s32 %s24, 1
        %s310 = smul.u32 %s309, 8
        %p311 = scmp.lt.s32.totalorder %s23, 1
        %s312 = scalar_select %p311, %s23, 1
        %p313 = scmp.lt.s32.totalorder %s310, 8
        %s314 = scalar_select %p313, %s310, 8
        %s315 = smul.addr %s314, 2
        %s316 = smul.addr %s312, 18
        %s317 = sadd.s32 %s315, %s316
        %s318 = smul.addr %s317, 8
        %s319 = scalar_lea.vmem %s1, %s318
        %s320 = sadd.s32 %s24, 1
        %s321 = smul.u32 %s320, 8
        %p322 = scmp.lt.s32.totalorder %s25, 0
        %s323 = scalar_select %p322, %s25, 0
        %s324 = scalar_lea.vmem %s3, %s323
        %s325 = smul.u32 8, %s24
        %s326 = smul.u32 %s25, 64
        %s327 = scalar_lea.vmem %s2, %s326
        %v328 = vld [vmem:[%s327] sm:$0xff]
        %v329 = vld [vmem:[%s327 + $0x8] sm:$0xff]
        %v330 = vld [vmem:[%s302] sm:$0xff]
        %v331 = vld [vmem:[%s302 + $0x10] sm:$0xff]
        %v332 = vld [vmem:[%s302 + $0x20] sm:$0xff]
        %v333 = vld [vmem:[%s302 + $0x30] sm:$0xff]
        %v334 = vld [vmem:[%s302 + $0x40] sm:$0xff]
        %v335 = vld [vmem:[%s302 + $0x50] sm:$0xff]
        %v336 = vld [vmem:[%s302 + $0x60] sm:$0xff]
        %v337 = vld [vmem:[%s302 + $0x70] sm:$0xff]
        %vm338 = vcmask 130048
        %v340 = vsel %vm338, %v330, 0
        %v343 = vsel %vm338, %v331, 0
        %v346 = vsel %vm338, %v332, 0
        %v349 = vsel %vm338, %v333, 0
        %v352 = vsel %vm338, %v334, 0
        %v355 = vsel %vm338, %v335, 0
        %v358 = vsel %vm338, %v336, 0
        %v361 = vsel %vm338, %v337, 0
        %363 = vmatprep.subr.mxu0 0.0
        %364 = vmatpush1.msra.mxu0 %v328
        %365 = vmatprep.subr.mxu0 0.0
        %366 = vmatpush1.msra.mxu0 %v329
        %367 = vmatprep.subr.mxu0 0.0
        %368 = vmatpush1.msra.mxu0 0.0
        %369 = vmatprep.subr.mxu0 0.0
        %370 = vmatpush1.msra.mxu0 0.0
        %371 = vmatprep.subr.mxu0 0.0
        %372 = vmatpush1.msra.mxu0 0.0
        %373 = vmatprep.subr.mxu0 0.0
        %374 = vmatpush1.msra.mxu0 0.0
        %375 = vmatprep.subr.mxu0 0.0
        %376 = vmatpush1.msra.mxu0 0.0
        %377 = vmatprep.subr.mxu0 0.0
        %378 = vmatpush1.msra.mxu0 0.0
        %379 = vmatprep.subr.mxu0 0.0
        %380 = vmatpush1.msra.mxu0 0.0
        %381 = vmatprep.subr.mxu0 0.0
        %382 = vmatpush1.msra.mxu0 0.0
        %383 = vmatprep.subr.mxu0 0.0
        %384 = vmatpush1.msra.mxu0 0.0
        %385 = vmatprep.subr.mxu0 0.0
        %386 = vmatpush1.msra.mxu0 0.0
        %387 = vmatprep.subr.mxu0 0.0
        %388 = vmatpush1.msra.mxu0 0.0
        %389 = vmatprep.subr.mxu0 0.0
        %390 = vmatpush1.msra.mxu0 0.0
        %391 = vmatprep.subr.mxu0 0.0
        %392 = vmatpush1.msra.mxu0 0.0
        %393 = vmatprep.subr.mxu0 0.0
        %394 = vmatpush1.msra.mxu0 0.0
        %395 = vmatprep.subr.mxu0 0.0
        %396 = vmatpush1.msra.mxu0 0.0
        %397 = vmatprep.subr.mxu0 0.0
        %398 = vmatpush1.msra.mxu0 0.0
        %399 = vmatprep.subr.mxu0 0.0
        %400 = vmatpush1.msra.mxu0 0.0
        %401 = vmatprep.subr.mxu0 0.0
        %402 = vmatpush1.msra.mxu0 0.0
        %403 = vmatprep.subr.mxu0 0.0
        %404 = vmatpush1.msra.mxu0 0.0
        %405 = vmatprep.subr.mxu0 0.0
        %406 = vmatpush1.msra.mxu0 0.0
        %407 = vmatprep.subr.mxu0 0.0
        %408 = vmatpush1.msra.mxu0 0.0
        %409 = vmatprep.subr.mxu0 0.0
        %410 = vmatpush1.msra.mxu0 0.0
        %411 = vmatprep.subr.mxu0 0.0
        %412 = vmatpush1.msra.mxu0 0.0
        %413 = vmatprep.subr.mxu0 0.0
        %414 = vmatpush1.msra.mxu0 0.0
        %415 = vmatprep.subr.mxu0 0.0
        %416 = vmatpush1.msra.mxu0 0.0
        %417 = vmatprep.subr.mxu0 0.0
        %418 = vmatpush1.msra.mxu0 0.0
        %419 = vmatprep.subr.mxu0 0.0
        %420 = vmatpush1.msra.mxu0 0.0
        %421 = vmatprep.subr.mxu0 0.0
        %422 = vmatpush1.msra.mxu0 0.0
        %423 = vmatprep.subr.mxu0 0.0
        %424 = vmatpush1.msra.mxu0 0.0
        %425 = vmatprep.subr.mxu0 0.0
        %426 = vmatpush1.msra.mxu0 0.0
        %427 = vmatprep.mubr.f32.mxu0 0.0
        %428 = vmatmul.mubr.f32.gmra.mrb[0].mxu0 %v340
        %v429 = vpop.f32.mrb[0].mxu0
        %v430 = vadd.f32 0.0, %v429
        %v431 = vpop.f32.mrb[0].mxu0
        %432 = vmatprep.mubr.f32.mxu0 0.0
        %433 = vmatmul.mubr.f32.gmra.mrb[0].mxu0 %v343
        %v434 = vpop.f32.mrb[0].mxu0
        %v435 = vadd.f32 0.0, %v434
        %v436 = vpop.f32.mrb[0].mxu0
        %437 = vmatprep.mubr.f32.mxu0 0.0
        %438 = vmatmul.mubr.f32.gmra.mrb[0].mxu0 %v346
        %v439 = vpop.f32.mrb[0].mxu0
        %v440 = vadd.f32 0.0, %v439
        %v441 = vpop.f32.mrb[0].mxu0
        %442 = vmatprep.mubr.f32.mxu0 0.0
        %443 = vmatmul.mubr.f32.gmra.mrb[0].mxu0 %v349
        %v444 = vpop.f32.mrb[0].mxu0
        %v445 = vadd.f32 0.0, %v444
        %v446 = vpop.f32.mrb[0].mxu0
        %447 = vmatprep.mubr.f32.mxu0 0.0
        %448 = vmatmul.mubr.f32.gmra.mrb[0].mxu0 %v352
        %v449 = vpop.f32.mrb[0].mxu0
        %v450 = vadd.f32 0.0, %v449
        %v451 = vpop.f32.mrb[0].mxu0
        %452 = vmatprep.mubr.f32.mxu0 0.0
        %453 = vmatmul.mubr.f32.gmra.mrb[0].mxu0 %v355
        %v454 = vpop.f32.mrb[0].mxu0
        %v455 = vadd.f32 0.0, %v454
        %v456 = vpop.f32.mrb[0].mxu0
        %457 = vmatprep.mubr.f32.mxu0 0.0
        %458 = vmatmul.mubr.f32.gmra.mrb[0].mxu0 %v358
        %v459 = vpop.f32.mrb[0].mxu0
        %v460 = vadd.f32 0.0, %v459
        %v461 = vpop.f32.mrb[0].mxu0
        %462 = vmatprep.mubr.f32.mxu0 0.0
        %463 = vmatmul.mubr.f32.gmra.mrb[0].mxu0 %v361
        %v464 = vpop.f32.mrb[0].mxu0
        %v465 = vadd.f32 0.0, %v464
        %v466 = vpop.f32.mrb[0].mxu0
        %467 = vdwg.mxu0
        %468 = vst [vmem:[#allocation2] sm:$0xff] %v430
        %469 = vst [vmem:[#allocation2 + $0x8] sm:$0xff] %v435
        %470 = vst [vmem:[#allocation2 + $0x10] sm:$0xff] %v440
        %471 = vst [vmem:[#allocation2 + $0x18] sm:$0xff] %v445
        %472 = vst [vmem:[#allocation2 + $0x20] sm:$0xff] %v450
        %473 = vst [vmem:[#allocation2 + $0x28] sm:$0xff] %v455
        %474 = vst [vmem:[#allocation2 + $0x30] sm:$0xff] %v460
        %475 = vst [vmem:[#allocation2 + $0x38] sm:$0xff] %v465
        %s476 = sadd.s32 16, %s326
        %s477 = scalar_lea.vmem %s2, %s476
        %v478 = vld [vmem:[%s477] sm:$0xff]
        %v479 = vld [vmem:[%s477 + $0x8] sm:$0xff]
        %v480 = vld [vmem:[%s302 + $0x1] sm:$0xff]
        %v481 = vld [vmem:[%s302 + $0x11] sm:$0xff]
        %v482 = vld [vmem:[%s302 + $0x21] sm:$0xff]
        %v483 = vld [vmem:[%s302 + $0x31] sm:$0xff]
        %v484 = vld [vmem:[%s302 + $0x41] sm:$0xff]
        %v485 = vld [vmem:[%s302 + $0x51] sm:$0xff]
        %v486 = vld [vmem:[%s302 + $0x61] sm:$0xff]
        %v487 = vld [vmem:[%s302 + $0x71] sm:$0xff]
        %v489 = vsel %vm338, %v480, 0
        %v492 = vsel %vm338, %v481, 0
        %v495 = vsel %vm338, %v482, 0
        %v498 = vsel %vm338, %v483, 0
        %v501 = vsel %vm338, %v484, 0
        %v504 = vsel %vm338, %v485, 0
        %v507 = vsel %vm338, %v486, 0
        %v510 = vsel %vm338, %v487, 0
        %512 = vmatprep.subr.mxu0 0.0
        %513 = vmatpush1.msra.mxu0 %v478
        %514 = vmatprep.subr.mxu0 0.0
        %515 = vmatpush1.msra.mxu0 %v479
        %516 = vmatprep.subr.mxu0 0.0
        %517 = vmatpush1.msra.mxu0 0.0
        %518 = vmatprep.subr.mxu0 0.0
        %519 = vmatpush1.msra.mxu0 0.0
        %520 = vmatprep.subr.mxu0 0.0
        %521 = vmatpush1.msra.mxu0 0.0
        %522 = vmatprep.subr.mxu0 0.0
        %523 = vmatpush1.msra.mxu0 0.0
        %524 = vmatprep.subr.mxu0 0.0
        %525 = vmatpush1.msra.mxu0 0.0
        %526 = vmatprep.subr.mxu0 0.0
        %527 = vmatpush1.msra.mxu0 0.0
        %528 = vmatprep.subr.mxu0 0.0
        %529 = vmatpush1.msra.mxu0 0.0
        %530 = vmatprep.subr.mxu0 0.0
        %531 = vmatpush1.msra.mxu0 0.0
        %532 = vmatprep.subr.mxu0 0.0
        %533 = vmatpush1.msra.mxu0 0.0
        %534 = vmatprep.subr.mxu0 0.0
        %535 = vmatpush1.msra.mxu0 0.0
        %536 = vmatprep.subr.mxu0 0.0
        %537 = vmatpush1.msra.mxu0 0.0
        %538 = vmatprep.subr.mxu0 0.0
        %539 = vmatpush1.msra.mxu0 0.0
        %540 = vmatprep.subr.mxu0 0.0
        %541 = vmatpush1.msra.mxu0 0.0
        %542 = vmatprep.subr.mxu0 0.0
        %543 = vmatpush1.msra.mxu0 0.0
        %544 = vmatprep.subr.mxu0 0.0
        %545 = vmatpush1.msra.mxu0 0.0
        %546 = vmatprep.subr.mxu0 0.0
        %547 = vmatpush1.msra.mxu0 0.0
        %548 = vmatprep.subr.mxu0 0.0
        %549 = vmatpush1.msra.mxu0 0.0
        %550 = vmatprep.subr.mxu0 0.0
        %551 = vmatpush1.msra.mxu0 0.0
        %552 = vmatprep.subr.mxu0 0.0
        %553 = vmatpush1.msra.mxu0 0.0
        %554 = vmatprep.subr.mxu0 0.0
        %555 = vmatpush1.msra.mxu0 0.0
        %556 = vmatprep.subr.mxu0 0.0
        %557 = vmatpush1.msra.mxu0 0.0
        %558 = vmatprep.subr.mxu0 0.0
        %559 = vmatpush1.msra.mxu0 0.0
        %560 = vmatprep.subr.mxu0 0.0
        %561 = vmatpush1.msra.mxu0 0.0
        %562 = vmatprep.subr.mxu0 0.0
        %563 = vmatpush1.msra.mxu0 0.0
        %564 = vmatprep.subr.mxu0 0.0
        %565 = vmatpush1.msra.mxu0 0.0
        %566 = vmatprep.subr.mxu0 0.0
        %567 = vmatpush1.msra.mxu0 0.0
        %568 = vmatprep.subr.mxu0 0.0
        %569 = vmatpush1.msra.mxu0 0.0
        %570 = vmatprep.subr.mxu0 0.0
        %571 = vmatpush1.msra.mxu0 0.0
        %572 = vmatprep.subr.mxu0 0.0
        %573 = vmatpush1.msra.mxu0 0.0
        %574 = vmatprep.subr.mxu0 0.0
        %575 = vmatpush1.msra.mxu0 0.0
        %576 = vmatprep.mubr.f32.mxu0 0.0
        %577 = vmatmul.mubr.f32.gmra.mrb[0].mxu0 %v489
        %v578 = vpop.f32.mrb[0].mxu0
        %v579 = vadd.f32 0.0, %v578
        %v580 = vpop.f32.mrb[0].mxu0
        %581 = vmatprep.mubr.f32.mxu0 0.0
        %582 = vmatmul.mubr.f32.gmra.mrb[0].mxu0 %v492
        %v583 = vpop.f32.mrb[0].mxu0
        %v584 = vadd.f32 0.0, %v583
        %v585 = vpop.f32.mrb[0].mxu0
        %586 = vmatprep.mubr.f32.mxu0 0.0
        %587 = vmatmul.mubr.f32.gmra.mrb[0].mxu0 %v495
        %v588 = vpop.f32.mrb[0].mxu0
        %v589 = vadd.f32 0.0, %v588
        %v590 = vpop.f32.mrb[0].mxu0
        %591 = vmatprep.mubr.f32.mxu0 0.0
        %592 = vmatmul.mubr.f32.gmra.mrb[0].mxu0 %v498
        %v593 = vpop.f32.mrb[0].mxu0
        %v594 = vadd.f32 0.0, %v593
        %v595 = vpop.f32.mrb[0].mxu0
        %596 = vmatprep.mubr.f32.mxu0 0.0
        %597 = vmatmul.mubr.f32.gmra.mrb[0].mxu0 %v501
        %v598 = vpop.f32.mrb[0].mxu0
        %v599 = vadd.f32 0.0, %v598
        %v600 = vpop.f32.mrb[0].mxu0
        %601 = vmatprep.mubr.f32.mxu0 0.0
        %602 = vmatmul.mubr.f32.gmra.mrb[0].mxu0 %v504
        %v603 = vpop.f32.mrb[0].mxu0
        %v604 = vadd.f32 0.0, %v603
        %v605 = vpop.f32.mrb[0].mxu0
        %606 = vmatprep.mubr.f32.mxu0 0.0
        %607 = vmatmul.mubr.f32.gmra.mrb[0].mxu0 %v507
        %v608 = vpop.f32.mrb[0].mxu0
        %v609 = vadd.f32 0.0, %v608
        %v610 = vpop.f32.mrb[0].mxu0
        %611 = vmatprep.mubr.f32.mxu0 0.0
        %612 = vmatmul.mubr.f32.gmra.mrb[0].mxu0 %v510
        %v613 = vpop.f32.mrb[0].mxu0
        %v614 = vadd.f32 0.0, %v613
        %v615 = vpop.f32.mrb[0].mxu0
        %616 = vdwg.mxu0
        %v617 = vld [vmem:[#allocation2] sm:$0xff]
        %v618 = vld [vmem:[#allocation2 + $0x8] sm:$0xff]
        %v619 = vld [vmem:[#allocation2 + $0x10] sm:$0xff]
        %v620 = vld [vmem:[#allocation2 + $0x18] sm:$0xff]
        %v621 = vld [vmem:[#allocation2 + $0x20] sm:$0xff]
        %v622 = vld [vmem:[#allocation2 + $0x28] sm:$0xff]
        %v623 = vld [vmem:[#allocation2 + $0x30] sm:$0xff]
        %v624 = vld [vmem:[#allocation2 + $0x38] sm:$0xff]
        %v625 = vadd.f32 %v617, %v579
        %v626 = vadd.f32 %v618, %v584
        %v627 = vadd.f32 %v619, %v589
        %v628 = vadd.f32 %v620, %v594
        %v629 = vadd.f32 %v621, %v599
        %v630 = vadd.f32 %v622, %v604
        %v631 = vadd.f32 %v623, %v609
        %v632 = vadd.f32 %v624, %v614
        %633 = vst [vmem:[#allocation2] sm:$0xff] %v625
        %634 = vst [vmem:[#allocation2 + $0x8] sm:$0xff] %v626
        %635 = vst [vmem:[#allocation2 + $0x10] sm:$0xff] %v627
        %636 = vst [vmem:[#allocation2 + $0x18] sm:$0xff] %v628
        %637 = vst [vmem:[#allocation2 + $0x20] sm:$0xff] %v629
        %638 = vst [vmem:[#allocation2 + $0x28] sm:$0xff] %v630
        %639 = vst [vmem:[#allocation2 + $0x30] sm:$0xff] %v631
        %640 = vst [vmem:[#allocation2 + $0x38] sm:$0xff] %v632
        %s641 = sadd.s32 32, %s326
        %s642 = scalar_lea.vmem %s2, %s641
        %v643 = vld [vmem:[%s642] sm:$0xff]
        %v644 = vld [vmem:[%s642 + $0x8] sm:$0xff]
        %s645 = scalar_lea.vmem %s302, 16
        %v646 = vld [vmem:[%s645] sm:$0xff]
        %v647 = vld [vmem:[%s645 + $0x10] sm:$0xff]
        %v648 = vld [vmem:[%s645 + $0x20] sm:$0xff]
        %v649 = vld [vmem:[%s645 + $0x30] sm:$0xff]
        %v650 = vld [vmem:[%s645 + $0x40] sm:$0xff]
        %v651 = vld [vmem:[%s645 + $0x50] sm:$0xff]
        %v652 = vld [vmem:[%s645 + $0x60] sm:$0xff]
        %v654 = vsel %vm338, %v646, 0
        %v657 = vsel %vm338, %v647, 0
        %v660 = vsel %vm338, %v648, 0
        %v663 = vsel %vm338, %v649, 0
        %v666 = vsel %vm338, %v650, 0
        %v669 = vsel %vm338, %v651, 0
        %v672 = vsel %vm338, %v652, 0
        %674 = vmatprep.subr.mxu0 0.0
        %675 = vmatpush1.msra.mxu0 %v643
        %676 = vmatprep.subr.mxu0 0.0
        %677 = vmatpush1.msra.mxu0 %v644
        %678 = vmatprep.subr.mxu0 0.0
        %679 = vmatpush1.msra.mxu0 0.0
        %680 = vmatprep.subr.mxu0 0.0
        %681 = vmatpush1.msra.mxu0 0.0
        %682 = vmatprep.subr.mxu0 0.0
        %683 = vmatpush1.msra.mxu0 0.0
        %684 = vmatprep.subr.mxu0 0.0
        %685 = vmatpush1.msra.mxu0 0.0
        %686 = vmatprep.subr.mxu0 0.0
        %687 = vmatpush1.msra.mxu0 0.0
        %688 = vmatprep.subr.mxu0 0.0
        %689 = vmatpush1.msra.mxu0 0.0
        %690 = vmatprep.subr.mxu0 0.0
        %691 = vmatpush1.msra.mxu0 0.0
        %692 = vmatprep.subr.mxu0 0.0
        %693 = vmatpush1.msra.mxu0 0.0
        %694 = vmatprep.subr.mxu0 0.0
        %695 = vmatpush1.msra.mxu0 0.0
        %696 = vmatprep.subr.mxu0 0.0
        %697 = vmatpush1.msra.mxu0 0.0
        %698 = vmatprep.subr.mxu0 0.0
        %699 = vmatpush1.msra.mxu0 0.0
        %700 = vmatprep.subr.mxu0 0.0
        %701 = vmatpush1.msra.mxu0 0.0
        %702 = vmatprep.subr.mxu0 0.0
        %703 = vmatpush1.msra.mxu0 0.0
        %704 = vmatprep.subr.mxu0 0.0
        %705 = vmatpush1.msra.mxu0 0.0
        %706 = vmatprep.subr.mxu0 0.0
        %707 = vmatpush1.msra.mxu0 0.0
        %708 = vmatprep.subr.mxu0 0.0
        %709 = vmatpush1.msra.mxu0 0.0
        %710 = vmatprep.subr.mxu0 0.0
        %711 = vmatpush1.msra.mxu0 0.0
        %712 = vmatprep.subr.mxu0 0.0
        %713 = vmatpush1.msra.mxu0 0.0
        %714 = vmatprep.subr.mxu0 0.0
        %715 = vmatpush1.msra.mxu0 0.0
        %716 = vmatprep.subr.mxu0 0.0
        %717 = vmatpush1.msra.mxu0 0.0
        %718 = vmatprep.subr.mxu0 0.0
        %719 = vmatpush1.msra.mxu0 0.0
        %720 = vmatprep.subr.mxu0 0.0
        %721 = vmatpush1.msra.mxu0 0.0
        %722 = vmatprep.subr.mxu0 0.0
        %723 = vmatpush1.msra.mxu0 0.0
        %724 = vmatprep.subr.mxu0 0.0
        %725 = vmatpush1.msra.mxu0 0.0
        %726 = vmatprep.subr.mxu0 0.0
        %727 = vmatpush1.msra.mxu0 0.0
        %728 = vmatprep.subr.mxu0 0.0
        %729 = vmatpush1.msra.mxu0 0.0
        %730 = vmatprep.subr.mxu0 0.0
        %731 = vmatpush1.msra.mxu0 0.0
        %732 = vmatprep.subr.mxu0 0.0
        %733 = vmatpush1.msra.mxu0 0.0
        %734 = vmatprep.subr.mxu0 0.0
        %735 = vmatpush1.msra.mxu0 0.0
        %736 = vmatprep.subr.mxu0 0.0
        %737 = vmatpush1.msra.mxu0 0.0
        %738 = vmatprep.mubr.f32.mxu0 0.0
        %739 = vmatmul.mubr.f32.gmra.mrb[0].mxu0 %v654
        %v740 = vpop.f32.mrb[0].mxu0
        %v741 = vadd.f32 0.0, %v740
        %v742 = vpop.f32.mrb[0].mxu0
        %743 = vmatprep.mubr.f32.mxu0 0.0
        %744 = vmatmul.mubr.f32.gmra.mrb[0].mxu0 %v657
        %v745 = vpop.f32.mrb[0].mxu0
        %v746 = vadd.f32 0.0, %v745
        %v747 = vpop.f32.mrb[0].mxu0
        %748 = vmatprep.mubr.f32.mxu0 0.0
        %749 = vmatmul.mubr.f32.gmra.mrb[0].mxu0 %v660
        %v750 = vpop.f32.mrb[0].mxu0
        %v751 = vadd.f32 0.0, %v750
        %v752 = vpop.f32.mrb[0].mxu0
        %753 = vmatprep.mubr.f32.mxu0 0.0
        %754 = vmatmul.mubr.f32.gmra.mrb[0].mxu0 %v663
        %v755 = vpop.f32.mrb[0].mxu0
        %v756 = vadd.f32 0.0, %v755
        %v757 = vpop.f32.mrb[0].mxu0
        %758 = vmatprep.mubr.f32.mxu0 0.0
        %759 = vmatmul.mubr.f32.gmra.mrb[0].mxu0 %v666
        %v760 = vpop.f32.mrb[0].mxu0
        %v761 = vadd.f32 0.0, %v760
        %v762 = vpop.f32.mrb[0].mxu0
        %763 = vmatprep.mubr.f32.mxu0 0.0
        %764 = vmatmul.mubr.f32.gmra.mrb[0].mxu0 %v669
        %v765 = vpop.f32.mrb[0].mxu0
        %v766 = vadd.f32 0.0, %v765
        %v767 = vpop.f32.mrb[0].mxu0
        %768 = vmatprep.mubr.f32.mxu0 0.0
        %769 = vmatmul.mubr.f32.gmra.mrb[0].mxu0 %v672
        %v770 = vpop.f32.mrb[0].mxu0
        %v771 = vadd.f32 0.0, %v770
        %v772 = vpop.f32.mrb[0].mxu0
        %773 = vdwg.mxu0
        %v774 = vld [vmem:[#allocation2] sm:$0xff]
        %v775 = vld [vmem:[#allocation2 + $0x8] sm:$0xff]
        %v776 = vld [vmem:[#allocation2 + $0x10] sm:$0xff]
        %v777 = vld [vmem:[#allocation2 + $0x18] sm:$0xff]
        %v778 = vld [vmem:[#allocation2 + $0x20] sm:$0xff]
        %v779 = vld [vmem:[#allocation2 + $0x28] sm:$0xff]
        %v780 = vld [vmem:[#allocation2 + $0x30] sm:$0xff]
        %v781 = vadd.f32 %v774, %v741
        %v782 = vadd.f32 %v775, %v746
        %v783 = vadd.f32 %v776, %v751
        %v784 = vadd.f32 %v777, %v756
        %v785 = vadd.f32 %v778, %v761
        %v786 = vadd.f32 %v779, %v766
        %v787 = vadd.f32 %v780, %v771
        %788 = vst [vmem:[#allocation2] sm:$0xff] %v781
        %789 = vst [vmem:[#allocation2 + $0x8] sm:$0xff] %v782
        %790 = vst [vmem:[#allocation2 + $0x10] sm:$0xff] %v783
        %791 = vst [vmem:[#allocation2 + $0x18] sm:$0xff] %v784
        %792 = vst [vmem:[#allocation2 + $0x20] sm:$0xff] %v785
        %793 = vst [vmem:[#allocation2 + $0x28] sm:$0xff] %v786
        %794 = vst [vmem:[#allocation2 + $0x30] sm:$0xff] %v787
        %v795 = vld [vmem:[%s319] sm:$0xff]
        %v796 = vld [vmem:[#allocation2 + $0x38] sm:$0xff]
        %v798 = vsel %vm338, %v795, 0
        %800 = vmatprep.subr.mxu0 0.0
        %801 = vmatpush1.msra.mxu0 %v643
        %802 = vmatprep.subr.mxu0 0.0
        %803 = vmatpush1.msra.mxu0 %v644
        %804 = vmatprep.subr.mxu0 0.0
        %805 = vmatpush1.msra.mxu0 0.0
        %806 = vmatprep.subr.mxu0 0.0
        %807 = vmatpush1.msra.mxu0 0.0
        %808 = vmatprep.subr.mxu0 0.0
        %809 = vmatpush1.msra.mxu0 0.0
        %810 = vmatprep.subr.mxu0 0.0
        %811 = vmatpush1.msra.mxu0 0.0
        %812 = vmatprep.subr.mxu0 0.0
        %813 = vmatpush1.msra.mxu0 0.0
        %814 = vmatprep.subr.mxu0 0.0
        %815 = vmatpush1.msra.mxu0 0.0
        %816 = vmatprep.subr.mxu0 0.0
        %817 = vmatpush1.msra.mxu0 0.0
        %818 = vmatprep.subr.mxu0 0.0
        %819 = vmatpush1.msra.mxu0 0.0
        %820 = vmatprep.subr.mxu0 0.0
        %821 = vmatpush1.msra.mxu0 0.0
        %822 = vmatprep.subr.mxu0 0.0
        %823 = vmatpush1.msra.mxu0 0.0
        %824 = vmatprep.subr.mxu0 0.0
        %825 = vmatpush1.msra.mxu0 0.0
        %826 = vmatprep.subr.mxu0 0.0
        %827 = vmatpush1.msra.mxu0 0.0
        %828 = vmatprep.subr.mxu0 0.0
        %829 = vmatpush1.msra.mxu0 0.0
        %830 = vmatprep.subr.mxu0 0.0
        %831 = vmatpush1.msra.mxu0 0.0
        %832 = vmatprep.subr.mxu0 0.0
        %833 = vmatpush1.msra.mxu0 0.0
        %834 = vmatprep.subr.mxu0 0.0
        %835 = vmatpush1.msra.mxu0 0.0
        %836 = vmatprep.subr.mxu0 0.0
        %837 = vmatpush1.msra.mxu0 0.0
        %838 = vmatprep.subr.mxu0 0.0
        %839 = vmatpush1.msra.mxu0 0.0
        %840 = vmatprep.subr.mxu0 0.0
        %841 = vmatpush1.msra.mxu0 0.0
        %842 = vmatprep.subr.mxu0 0.0
        %843 = vmatpush1.msra.mxu0 0.0
        %844 = vmatprep.subr.mxu0 0.0
        %845 = vmatpush1.msra.mxu0 0.0
        %846 = vmatprep.subr.mxu0 0.0
        %847 = vmatpush1.msra.mxu0 0.0
        %848 = vmatprep.subr.mxu0 0.0
        %849 = vmatpush1.msra.mxu0 0.0
        %850 = vmatprep.subr.mxu0 0.0
        %851 = vmatpush1.msra.mxu0 0.0
        %852 = vmatprep.subr.mxu0 0.0
        %853 = vmatpush1.msra.mxu0 0.0
        %854 = vmatprep.subr.mxu0 0.0
        %855 = vmatpush1.msra.mxu0 0.0
        %856 = vmatprep.subr.mxu0 0.0
        %857 = vmatpush1.msra.mxu0 0.0
        %858 = vmatprep.subr.mxu0 0.0
        %859 = vmatpush1.msra.mxu0 0.0
        %860 = vmatprep.subr.mxu0 0.0
        %861 = vmatpush1.msra.mxu0 0.0
        %862 = vmatprep.subr.mxu0 0.0
        %863 = vmatpush1.msra.mxu0 0.0
        %864 = vmatprep.mubr.f32.mxu0 0.0
        %865 = vmatmul.mubr.f32.gmra.mrb[0].mxu0 %v798
        %v866 = vpop.f32.mrb[0].mxu0
        %v867 = vadd.f32 0.0, %v866
        %v868 = vpop.f32.mrb[0].mxu0
        %869 = vdwg.mxu0
        %v870 = vadd.f32 %v796, %v867
        %871 = vst [vmem:[#allocation2 + $0x38] sm:$0xff] %v870
        %s872 = sadd.s32 48, %s326
        %s873 = scalar_lea.vmem %s2, %s872
        %v874 = vld [vmem:[%s873] sm:$0xff]
        %v875 = vld [vmem:[%s873 + $0x8] sm:$0xff]
        %v876 = vld [vmem:[%s645 + $0x1] sm:$0xff]
        %v877 = vld [vmem:[%s645 + $0x11] sm:$0xff]
        %v878 = vld [vmem:[%s645 + $0x21] sm:$0xff]
        %v879 = vld [vmem:[%s645 + $0x31] sm:$0xff]
        %v880 = vld [vmem:[%s645 + $0x41] sm:$0xff]
        %v881 = vld [vmem:[%s645 + $0x51] sm:$0xff]
        %v882 = vld [vmem:[%s645 + $0x61] sm:$0xff]
        %v884 = vsel %vm338, %v876, 0
        %v887 = vsel %vm338, %v877, 0
        %v890 = vsel %vm338, %v878, 0
        %v893 = vsel %vm338, %v879, 0
        %v896 = vsel %vm338, %v880, 0
        %v899 = vsel %vm338, %v881, 0
        %v902 = vsel %vm338, %v882, 0
        %904 = vmatprep.subr.mxu0 0.0
        %905 = vmatpush1.msra.mxu0 %v874
        %906 = vmatprep.subr.mxu0 0.0
        %907 = vmatpush1.msra.mxu0 %v875
        %908 = vmatprep.subr.mxu0 0.0
        %909 = vmatpush1.msra.mxu0 0.0
        %910 = vmatprep.subr.mxu0 0.0
        %911 = vmatpush1.msra.mxu0 0.0
        %912 = vmatprep.subr.mxu0 0.0
        %913 = vmatpush1.msra.mxu0 0.0
        %914 = vmatprep.subr.mxu0 0.0
        %915 = vmatpush1.msra.mxu0 0.0
        %916 = vmatprep.subr.mxu0 0.0
        %917 = vmatpush1.msra.mxu0 0.0
        %918 = vmatprep.subr.mxu0 0.0
        %919 = vmatpush1.msra.mxu0 0.0
        %920 = vmatprep.subr.mxu0 0.0
        %921 = vmatpush1.msra.mxu0 0.0
        %922 = vmatprep.subr.mxu0 0.0
        %923 = vmatpush1.msra.mxu0 0.0
        %924 = vmatprep.subr.mxu0 0.0
        %925 = vmatpush1.msra.mxu0 0.0
        %926 = vmatprep.subr.mxu0 0.0
        %927 = vmatpush1.msra.mxu0 0.0
        %928 = vmatprep.subr.mxu0 0.0
        %929 = vmatpush1.msra.mxu0 0.0
        %930 = vmatprep.subr.mxu0 0.0
        %931 = vmatpush1.msra.mxu0 0.0
        %932 = vmatprep.subr.mxu0 0.0
        %933 = vmatpush1.msra.mxu0 0.0
        %934 = vmatprep.subr.mxu0 0.0
        %935 = vmatpush1.msra.mxu0 0.0
        %936 = vmatprep.subr.mxu0 0.0
        %937 = vmatpush1.msra.mxu0 0.0
        %938 = vmatprep.subr.mxu0 0.0
        %939 = vmatpush1.msra.mxu0 0.0
        %940 = vmatprep.subr.mxu0 0.0
        %941 = vmatpush1.msra.mxu0 0.0
        %942 = vmatprep.subr.mxu0 0.0
        %943 = vmatpush1.msra.mxu0 0.0
        %944 = vmatprep.subr.mxu0 0.0
        %945 = vmatpush1.msra.mxu0 0.0
        %946 = vmatprep.subr.mxu0 0.0
        %947 = vmatpush1.msra.mxu0 0.0
        %948 = vmatprep.subr.mxu0 0.0
        %949 = vmatpush1.msra.mxu0 0.0
        %950 = vmatprep.subr.mxu0 0.0
        %951 = vmatpush1.msra.mxu0 0.0
        %952 = vmatprep.subr.mxu0 0.0
        %953 = vmatpush1.msra.mxu0 0.0
        %954 = vmatprep.subr.mxu0 0.0
        %955 = vmatpush1.msra.mxu0 0.0
        %956 = vmatprep.subr.mxu0 0.0
        %957 = vmatpush1.msra.mxu0 0.0
        %958 = vmatprep.subr.mxu0 0.0
        %959 = vmatpush1.msra.mxu0 0.0
        %960 = vmatprep.subr.mxu0 0.0
        %961 = vmatpush1.msra.mxu0 0.0
        %962 = vmatprep.subr.mxu0 0.0
        %963 = vmatpush1.msra.mxu0 0.0
        %964 = vmatprep.subr.mxu0 0.0
        %965 = vmatpush1.msra.mxu0 0.0
        %966 = vmatprep.subr.mxu0 0.0
        %967 = vmatpush1.msra.mxu0 0.0
        %968 = vmatprep.mubr.f32.mxu0 0.0
        %969 = vmatmul.mubr.f32.gmra.mrb[0].mxu0 %v884
        %v970 = vpop.f32.mrb[0].mxu0
        %v971 = vadd.f32 0.0, %v970
        %v972 = vpop.f32.mrb[0].mxu0
        %973 = vmatprep.mubr.f32.mxu0 0.0
        %974 = vmatmul.mubr.f32.gmra.mrb[0].mxu0 %v887
        %v975 = vpop.f32.mrb[0].mxu0
        %v976 = vadd.f32 0.0, %v975
        %v977 = vpop.f32.mrb[0].mxu0
        %978 = vmatprep.mubr.f32.mxu0 0.0
        %979 = vmatmul.mubr.f32.gmra.mrb[0].mxu0 %v890
        %v980 = vpop.f32.mrb[0].mxu0
        %v981 = vadd.f32 0.0, %v980
        %v982 = vpop.f32.mrb[0].mxu0
        %983 = vmatprep.mubr.f32.mxu0 0.0
        %984 = vmatmul.mubr.f32.gmra.mrb[0].mxu0 %v893
        %v985 = vpop.f32.mrb[0].mxu0
        %v986 = vadd.f32 0.0, %v985
        %v987 = vpop.f32.mrb[0].mxu0
        %988 = vmatprep.mubr.f32.mxu0 0.0
        %989 = vmatmul.mubr.f32.gmra.mrb[0].mxu0 %v896
        %v990 = vpop.f32.mrb[0].mxu0
        %v991 = vadd.f32 0.0, %v990
        %v992 = vpop.f32.mrb[0].mxu0
        %993 = vmatprep.mubr.f32.mxu0 0.0
        %994 = vmatmul.mubr.f32.gmra.mrb[0].mxu0 %v899
        %v995 = vpop.f32.mrb[0].mxu0
        %v996 = vadd.f32 0.0, %v995
        %v997 = vpop.f32.mrb[0].mxu0
        %998 = vmatprep.mubr.f32.mxu0 0.0
        %999 = vmatmul.mubr.f32.gmra.mrb[0].mxu0 %v902
        %v1000 = vpop.f32.mrb[0].mxu0
        %v1001 = vadd.f32 0.0, %v1000
        %v1002 = vpop.f32.mrb[0].mxu0
        %1003 = vdwg.mxu0
        %v1004 = vld [vmem:[#allocation2] sm:$0xff]
        %v1005 = vld [vmem:[#allocation2 + $0x8] sm:$0xff]
        %v1006 = vld [vmem:[#allocation2 + $0x10] sm:$0xff]
        %v1007 = vld [vmem:[#allocation2 + $0x18] sm:$0xff]
        %v1008 = vld [vmem:[#allocation2 + $0x20] sm:$0xff]
        %v1009 = vld [vmem:[#allocation2 + $0x28] sm:$0xff]
        %v1010 = vld [vmem:[#allocation2 + $0x30] sm:$0xff]
        %v1011 = vadd.f32 %v1004, %v971
        %v1012 = vadd.f32 %v1005, %v976
        %v1013 = vadd.f32 %v1006, %v981
        %v1014 = vadd.f32 %v1007, %v986
        %v1015 = vadd.f32 %v1008, %v991
        %v1016 = vadd.f32 %v1009, %v996
        %v1017 = vadd.f32 %v1010, %v1001
        %1018 = vst [vmem:[#allocation2] sm:$0xff] %v1011
        %1019 = vst [vmem:[#allocation2 + $0x8] sm:$0xff] %v1012
        %1020 = vst [vmem:[#allocation2 + $0x10] sm:$0xff] %v1013
        %1021 = vst [vmem:[#allocation2 + $0x18] sm:$0xff] %v1014
        %1022 = vst [vmem:[#allocation2 + $0x20] sm:$0xff] %v1015
        %1023 = vst [vmem:[#allocation2 + $0x28] sm:$0xff] %v1016
        %1024 = vst [vmem:[#allocation2 + $0x30] sm:$0xff] %v1017
        %v1025 = vld [vmem:[%s319 + $0x1] sm:$0xff]
        %v1026 = vld [vmem:[#allocation2 + $0x38] sm:$0xff]
        %v1028 = vsel %vm338, %v1025, 0
        %1030 = vmatprep.subr.mxu0 0.0
        %1031 = vmatpush1.msra.mxu0 %v874
        %1032 = vmatprep.subr.mxu0 0.0
        %1033 = vmatpush1.msra.mxu0 %v875
        %1034 = vmatprep.subr.mxu0 0.0
        %1035 = vmatpush1.msra.mxu0 0.0
        %1036 = vmatprep.subr.mxu0 0.0
        %1037 = vmatpush1.msra.mxu0 0.0
        %1038 = vmatprep.subr.mxu0 0.0
        %1039 = vmatpush1.msra.mxu0 0.0
        %1040 = vmatprep.subr.mxu0 0.0
        %1041 = vmatpush1.msra.mxu0 0.0
        %1042 = vmatprep.subr.mxu0 0.0
        %1043 = vmatpush1.msra.mxu0 0.0
        %1044 = vmatprep.subr.mxu0 0.0
        %1045 = vmatpush1.msra.mxu0 0.0
        %1046 = vmatprep.subr.mxu0 0.0
        %1047 = vmatpush1.msra.mxu0 0.0
        %1048 = vmatprep.subr.mxu0 0.0
        %1049 = vmatpush1.msra.mxu0 0.0
        %1050 = vmatprep.subr.mxu0 0.0
        %1051 = vmatpush1.msra.mxu0 0.0
        %1052 = vmatprep.subr.mxu0 0.0
        %1053 = vmatpush1.msra.mxu0 0.0
        %1054 = vmatprep.subr.mxu0 0.0
        %1055 = vmatpush1.msra.mxu0 0.0
        %1056 = vmatprep.subr.mxu0 0.0
        %1057 = vmatpush1.msra.mxu0 0.0
        %1058 = vmatprep.subr.mxu0 0.0
        %1059 = vmatpush1.msra.mxu0 0.0
        %1060 = vmatprep.subr.mxu0 0.0
        %1061 = vmatpush1.msra.mxu0 0.0
        %1062 = vmatprep.subr.mxu0 0.0
        %1063 = vmatpush1.msra.mxu0 0.0
        %1064 = vmatprep.subr.mxu0 0.0
        %1065 = vmatpush1.msra.mxu0 0.0
        %1066 = vmatprep.subr.mxu0 0.0
        %1067 = vmatpush1.msra.mxu0 0.0
        %1068 = vmatprep.subr.mxu0 0.0
        %1069 = vmatpush1.msra.mxu0 0.0
        %1070 = vmatprep.subr.mxu0 0.0
        %1071 = vmatpush1.msra.mxu0 0.0
        %1072 = vmatprep.subr.mxu0 0.0
        %1073 = vmatpush1.msra.mxu0 0.0
        %1074 = vmatprep.subr.mxu0 0.0
        %1075 = vmatpush1.msra.mxu0 0.0
        %1076 = vmatprep.subr.mxu0 0.0
        %1077 = vmatpush1.msra.mxu0 0.0
        %1078 = vmatprep.subr.mxu0 0.0
        %1079 = vmatpush1.msra.mxu0 0.0
        %1080 = vmatprep.subr.mxu0 0.0
        %1081 = vmatpush1.msra.mxu0 0.0
        %1082 = vmatprep.subr.mxu0 0.0
        %1083 = vmatpush1.msra.mxu0 0.0
        %1084 = vmatprep.subr.mxu0 0.0
        %1085 = vmatpush1.msra.mxu0 0.0
        %1086 = vmatprep.subr.mxu0 0.0
        %1087 = vmatpush1.msra.mxu0 0.0
        %1088 = vmatprep.subr.mxu0 0.0
        %1089 = vmatpush1.msra.mxu0 0.0
        %1090 = vmatprep.subr.mxu0 0.0
        %1091 = vmatpush1.msra.mxu0 0.0
        %1092 = vmatprep.subr.mxu0 0.0
        %1093 = vmatpush1.msra.mxu0 0.0
        %1094 = vmatprep.mubr.f32.mxu0 0.0
        %1095 = vmatmul.mubr.f32.gmra.mrb[0].mxu0 %v1028
        %v1096 = vpop.f32.mrb[0].mxu0
        %v1097 = vadd.f32 0.0, %v1096
        %v1098 = vpop.f32.mrb[0].mxu0
        %1099 = vdwg.mxu0
        %v1100 = vadd.f32 %v1026, %v1097
        %1101 = vst [vmem:[#allocation2 + $0x38] sm:$0xff] %v1100
        %v1102 = vld [vmem:[#allocation2] sm:$0xff]
        %v1103 = vld [vmem:[#allocation2 + $0x8] sm:$0xff]
        %v1104 = vld [vmem:[#allocation2 + $0x10] sm:$0xff]
        %v1105 = vld [vmem:[#allocation2 + $0x18] sm:$0xff]
        %v1106 = vld [vmem:[#allocation2 + $0x20] sm:$0xff]
        %v1107 = vld [vmem:[#allocation2 + $0x28] sm:$0xff]
        %v1108 = vld [vmem:[#allocation2 + $0x30] sm:$0xff]
        %v1109 = vld [vmem:[#allocation2 + $0x38] sm:$0xff]
        %v1110 = vld [vmem:[%s324] sm:$0x1]
        %v1112 = vlaneseq
        %v1113 = vshrl.u32 %v1112, 7
        %v1114 = vsub.s32 0, %v1113
        %v1115 = vrot.slane %v1110, %v1114
        %v1117 = vadd.f32 %v1102, %v1115
        %v1118 = vadd.f32 %v1103, %v1115
        %v1119 = vadd.f32 %v1104, %v1115
        %v1120 = vadd.f32 %v1105, %v1115
        %v1121 = vadd.f32 %v1106, %v1115
        %v1122 = vadd.f32 %v1107, %v1115
        %v1123 = vadd.f32 %v1108, %v1115
        %v1124 = vadd.f32 %v1109, %v1115
        %1125 = vst [vmem:[%s287] sm:$0xff] %v1117
        %1126 = vst [vmem:[%s287 + $0x8] sm:$0xff] %v1118
        %1127 = vst [vmem:[%s287 + $0x10] sm:$0xff] %v1119
        %1128 = vst [vmem:[%s287 + $0x18] sm:$0xff] %v1120
        %1129 = vst [vmem:[%s287 + $0x20] sm:$0xff] %v1121
        %1130 = vst [vmem:[%s287 + $0x28] sm:$0xff] %v1122
        %1131 = vst [vmem:[%s287 + $0x30] sm:$0xff] %v1123
        %1132 = vst [vmem:[%s287 + $0x38] sm:$0xff] %v1124
        %s1133 = sand.u32 %s156, 1
        %s1134 = scalar_lea.sflag [#allocation4], %s1133
        %s1135 = sand.u32 %s156, 1
        %s1136 = smul.addr %s1135, 64
        %s1137 = scalar_lea.vmem [#allocation3], %s1136
        // Predicated region
        $region37: #{tpu_custom_call.1} parent=35 // pred_check
          %p1138 = pneg %p166
        $region38: #{tpu_custom_call.1} parent=35 // pred_check_branch
          %1140 = sbr.rel (%p1138) target = $region40
        $region39: #{tpu_custom_call.1} parent=35 // pred_region
          %s1141 = smul.u32 8, %s24
          %s1143 = ssub.s32 1024, 1024
          %1144 = vsyncadd %s1134, %s1143
          %s1145 = sadd.s32 %s25, %s1141
          %s1146 = smul.addr %s23, 8
          %s1147 = sadd.s32 %s1145, %s1146
          %s1148 = smul.addr %s1147, 128
          %s1149 = scalar_lea.hbm %s4, %s1148
          %s1150 = sshll.u32 %s1137, 4
          %s1151 = int_to_ptr.vmem [resolvable:$true] %s1150
          %1156 = dma.vmem_to_hbm [thread:$0]  %s1151, 1024, %s1149, %s1134, 128, 128, 8
        $region40: #{tpu_custom_call.1} parent=35 // pred_fallthru
          _
      $region36: #{tpu_custom_call.1} parent=5 // pred_fallthru
        _
      %p1157 = scmp.le.s32.totalorder 2, %s13
      // Predicated region
      $region41: #{tpu_custom_call.1} parent=5 // pred_check
        %p1158 = pneg %p1157
      $region42: #{tpu_custom_call.1} parent=5 // pred_check_branch
        %1160 = sbr.rel (%p1158) target = $region44
      $region43: #{tpu_custom_call.1} parent=5 // pred_region
        %s1161 = ssub.s32 %s13, 2
        // Predicated region
        $region45: #{tpu_custom_call.1} parent=43 // pred_check
          %p1162 = pneg %p172
        $region46: #{tpu_custom_call.1} parent=43 // pred_check_branch
          %1164 = sbr.rel (%p1162) target = $region48
        $region47: #{tpu_custom_call.1} parent=43 // pred_region
          %s1165 = sand.u32 %s157, 1
          %s1166 = scalar_lea.sflag [#allocation4], %s1165
          %s1167 = sand.u32 %s157, 1
          %s1168 = smul.addr %s1167, 64
          %s1169 = scalar_lea.vmem [#allocation3], %s1168
          %1170 = dma.done %s1166, 1024
        $region48: #{tpu_custom_call.1} parent=43 // pred_fallthru
          _
      $region44: #{tpu_custom_call.1} parent=5 // pred_fallthru
        _
    $region6: #{tpu_custom_call.1} parent=1 // loop_footer
      %s17 = sadd.s32 1, %s13
    $region7: #{tpu_custom_call.1} parent=1 // loop_footer_branch
      %12 = sbr.rel target = $region3
    $region8: #{tpu_custom_call.1} parent=1 // loop_exit
      _
    %1171 = vsyncpa [#allocation4], 1
    %s1172 = scalar_lea.sflag [#allocation4], 1
    %1173 = vsyncpa %s1172, 1

</llo_original>
